<compile_context>
chip_gen: v7x
topology: tpu7x:2x2x1
jax: 0.10.0
libtpu: 0.0.40
codegen_flags: <defaults>
</compile_context>

<pallas_src>
import jax
import jax.numpy as jnp
import numpy as np
from jax.experimental import pallas as pl
from jax.experimental.pallas import tpu as pltpu

VOCAB_SIZE = 18
EMBED_SIZE = 15
HIDDEN_SIZE = 50

GW = 128          # one lane tile holds both directions' hidden state + the bias lane
NGATES = 3        # r, z, n (gate-major blocks of 128 lanes each)
FWD_OFF = 0       # forward-direction hidden occupies lanes [0, H)
BWD_OFF = 64      # backward-direction hidden occupies lanes [64, 64+H)
BIAS_LANE = 127   # always-1.0 lane of h; row 127 of W_hh holds b_hh (bias fold)

assert HIDDEN_SIZE <= BWD_OFF and BWD_OFF + HIDDEN_SIZE <= BIAS_LANE


def encoder_gru_kernel(ids_ref, gx_ref, w_hh_ref, h0_ref, out_ref, h_scratch):
    """One bidirectional GRU step per grid iteration; hidden carried in VMEM scratch.

    gx_ref:    (1, 1, 3*GW)  per-step row of emb @ W_ih_fused + b_ih_fused (gathered via index_map)
    w_hh_ref:  (GW, 3*GW)    compact block-striped recurrent weights, row 127 = b_hh (resident)
    h0_ref:    (1, GW)       packed initial hidden [h_fwd | 0 | h_bwd | 0 | ... | 1.0]
    out_ref:   (1, 1, GW)    packed new hidden for this timestep
    h_scratch: (1, GW)       carried hidden state (persists across grid iterations)
    """
    del ids_ref  # token ids are consumed by the gx_tab index_map (scalar prefetch)
    t = pl.program_id(0)

    @pl.when(t == 0)
    def _():
        h_scratch[...] = h0_ref[...]

    h = h_scratch[...]                                   # (1, GW); bias lane == 1.0, pads == 0
    gx = gx_ref[0]                                       # (1, 3*GW) = emb[idx] @ W_ih + b_ih
    # One MXU push for both directions / all 3 gates; b_hh included via the bias lane/row.
    gh = jnp.dot(h, w_hh_ref[...], preferred_element_type=jnp.float32)   # (1, 3*GW)

    r = jax.nn.sigmoid(gx[:, 0:GW] + gh[:, 0:GW])
    z = jax.nn.sigmoid(gx[:, GW:2 * GW] + gh[:, GW:2 * GW])
    n = jnp.tanh(gx[:, 2 * GW:3 * GW] + r * gh[:, 2 * GW:3 * GW])
    h_new = (1.0 - z) * n + z * h                        # (1, GW)

    # Restore the packing invariant so it survives the recurrence:
    # pad lanes stay exactly 0, bias lane stays exactly 1.0.
    lane = jax.lax.broadcasted_iota(jnp.int32, (1, GW), 1)
    keep = (lane < HIDDEN_SIZE) | ((lane >= BWD_OFF) & (lane < BWD_OFF + HIDDEN_SIZE))
    h_new = jnp.where(keep, h_new, 0.0)
    h_new = jnp.where(lane == BIAS_LANE, 1.0, h_new)

    h_scratch[...] = h_new
    out_ref[0] = h_new                                   # unmasked 128-lane store


def encoder_forward_sequence(tokens, hidden, fused_params):
    """Equivalent to calling Encoder.forward T times with hidden fed back, in ONE pallas_call.

    Returns (outputs (T, 1, 2H), final hidden (2, 1, H)).
    """
    gx_tab, w_hh_f = fused_params
    H = hidden.shape[-1]
    ids = jnp.asarray(tokens, jnp.int32).reshape(-1)
    T = ids.shape[0]

    # Pack (2, 1, H) hidden into one 128-lane vector: [h_fwd | 0-pad | h_bwd | 0-pad | ... | 1.0]
    h0 = jnp.zeros((1, GW), jnp.float32)
    h0 = h0.at[0, FWD_OFF:FWD_OFF + H].set(hidden[0, 0])
    h0 = h0.at[0, BWD_OFF:BWD_OFF + H].set(hidden[1, 0])
    h0 = h0.at[0, BIAS_LANE].set(1.0)

    def gx_map(t, ids_ref):
        v = ids_ref[t]
        v = jnp.where(v >= VOCAB_SIZE, 2, v)   # embed_x[embed_x >= vocab_size] = 2
        v = jnp.where(v < 0, 0, v)             # defend against OOB gather for negative ids
        return (v, 0, 0)

    grid_spec = pltpu.PrefetchScalarGridSpec(
        num_scalar_prefetch=1,                 # token ids -> SMEM, drive the gx row gather
        grid=(T,),
        in_specs=[
            pl.BlockSpec((1, 1, NGATES * GW), gx_map),                 # per-step row gather
            pl.BlockSpec((GW, NGATES * GW), lambda t, ids_ref: (0, 0)),  # resident weights
            pl.BlockSpec((1, GW), lambda t, ids_ref: (0, 0)),            # resident h0
        ],
        out_specs=pl.BlockSpec((1, 1, GW), lambda t, ids_ref: (t, 0, 0)),
        scratch_shapes=[pltpu.VMEM((1, GW), jnp.float32)],             # carried hidden state
    )

    packed = pl.pallas_call(
        encoder_gru_kernel,
        out_shape=jax.ShapeDtypeStruct((T, 1, GW), jnp.float32),
        grid_spec=grid_spec,
        compiler_params=pltpu.CompilerParams(dimension_semantics=("arbitrary",)),
    )(ids, gx_tab, w_hh_f, h0)

    # Unpack in glue (layout plumbing stays outside the kernel).
    h_fwd = packed[:, 0, FWD_OFF:FWD_OFF + H]                          # (T, H)
    h_bwd = packed[:, 0, BWD_OFF:BWD_OFF + H]                          # (T, H)
    outputs = jnp.concatenate([h_fwd, h_bwd], axis=-1)[:, None, :]     # (T, 1, 2H)
    h_final = jnp.stack([h_fwd[-1], h_bwd[-1]], axis=0)[:, None, :]    # (2, 1, H)
    return outputs, h_final


def encoder_forward(token, hidden, fused_params):
    """Matches Encoder.forward(input, hidden): returns (output (1,1,2H), hidden (2,1,H))."""
    outputs, h_final = encoder_forward_sequence(jnp.reshape(token, (1,)), hidden, fused_params)
    return outputs[0:1], h_final


def init_params(key):
    """Natural (PyTorch-like) parameter layout; gate axis is [r, z, n]."""
    ks = jax.random.split(key, 5)
    emb = jax.random.normal(ks[0], (VOCAB_SIZE, EMBED_SIZE), jnp.float32)
    bound = 1.0 / np.sqrt(HIDDEN_SIZE)
    w_ih = jax.random.uniform(ks[1], (2, 3, HIDDEN_SIZE, EMBED_SIZE), jnp.float32, -bound, bound)
    w_hh = jax.random.uniform(ks[2], (2, 3, HIDDEN_SIZE, HIDDEN_SIZE), jnp.float32, -bound, bound)
    b_ih = jax.random.uniform(ks[3], (2, 3, 1, HIDDEN_SIZE), jnp.float32, -bound, bound)
    b_hh = jax.random.uniform(ks[4], (2, 3, 1, HIDDEN_SIZE), jnp.float32, -bound, bound)
    w_ih_t = jnp.transpose(w_ih, (0, 1, 3, 2))   # (2, 3, E, H)  (in -> out orientation)
    w_hh_t = jnp.transpose(w_hh, (0, 1, 3, 2))   # (2, 3, H, H)
    return emb, w_ih_t, w_hh_t, b_ih, b_hh


def prepare_fused_params(params):
    """Host/XLA-side layout work (done once): compact striped W_hh + fused gx gather table."""
    emb, w_ih_t, w_hh_t, b_ih, b_hh = params
    E = emb.shape[1]
    H = w_hh_t.shape[-1]
    assert H <= BWD_OFF and BWD_OFF + H <= BIAS_LANE

    w_ih_f = jnp.zeros((E, NGATES * GW), jnp.float32)
    b_ih_f = jnp.zeros((1, NGATES * GW), jnp.float32)
    w_hh_f = jnp.zeros((GW, NGATES * GW), jnp.float32)
    for d, row_off in enumerate((FWD_OFF, BWD_OFF)):
        for g in range(NGATES):
            c = g * GW + row_off
            w_ih_f = w_ih_f.at[:, c:c + H].set(w_ih_t[d, g])
            b_ih_f = b_ih_f.at[0, c:c + H].set(b_ih[d, g, 0])
            w_hh_f = w_hh_f.at[row_off:row_off + H, c:c + H].set(w_hh_t[d, g])
            # b_hh folded into the matmul: bias lane of h is always 1.0, row 127 carries b_hh.
            w_hh_f = w_hh_f.at[BIAS_LANE, c:c + H].set(b_hh[d, g, 0])

    # Fold embedding lookup + input projection + input bias into one gather table:
    # gx_tab[v] = emb[v] @ W_ih_fused + b_ih_fused  (exactly equivalent, computed once in glue).
    gx_tab = (emb @ w_ih_f + b_ih_f)[:, None, :]     # (VOCAB, 1, NGATES*GW)
    return gx_tab, w_hh_f


def reference_sequence(tokens, hidden, params):
    """Pure-JAX reference: the PyTorch module stepped once per token, hidden fed back."""
    emb, w_ih_t, w_hh_t, b_ih, b_hh = params
    outs = []
    h = hidden
    for tok in np.asarray(tokens):
        idx = 2 if int(tok) >= VOCAB_SIZE else int(tok)
        x = emb[idx][None, :]                                    # (1, E)
        h_news = []
        for d in range(2):
            h_prev = h[d]                                        # (1, H)
            gx = [x @ w_ih_t[d, g] + b_ih[d, g] for g in range(3)]
            gh = [h_prev @ w_hh_t[d, g] + b_hh[d, g] for g in range(3)]
            r = jax.nn.sigmoid(gx[0] + gh[0])
            z = jax.nn.sigmoid(gx[1] + gh[1])
            n = jnp.tanh(gx[2] + r * gh[2])
            h_news.append((1.0 - z) * n + z * h_prev)
        outs.append(jnp.concatenate(h_news, axis=-1))            # (1, 2H)
        h = jnp.stack(h_news, axis=0)                            # (2, 1, H)
    return jnp.stack(outs, axis=0), h                            # (T, 1, 2H), (2, 1, H)


if __name__ == "__main__":
    key = jax.random.PRNGKey(0)
    pkey, ikey, hkey, skey = jax.random.split(key, 4)
    params = init_params(pkey)
    fused = prepare_fused_params(params)

    # --- Single-step forward: exactly Encoder.forward(input, hidden) ---
    token = jax.random.randint(ikey, (1,), 0, VOCAB_SIZE + 5, dtype=jnp.int32)  # exercises clamp
    hidden = jax.random.normal(hkey, (2, 1, HIDDEN_SIZE), jnp.float32)          # initHidden() -> zeros
    out, h_out = encoder_forward(token, hidden, fused)
    jax.block_until_ready((out, h_out))
    assert out.shape == (1, 1, 2 * HIDDEN_SIZE)
    assert h_out.shape == (2, 1, HIDDEN_SIZE)
    ref_out, ref_h = reference_sequence(token, hidden, params)
    np.testing.assert_allclose(np.asarray(out), np.asarray(ref_out[0:1]), rtol=1e-4, atol=1e-5)
    np.testing.assert_allclose(np.asarray(h_out), np.asarray(ref_h), rtol=1e-4, atol=1e-5)

    # --- Looped version: T steps inside one kernel (weights resident, ids scalar-prefetched) ---
    T = 8
    tokens = jax.random.randint(skey, (T,), 0, VOCAB_SIZE + 5, dtype=jnp.int32)
    outs, h_fin = encoder_forward_sequence(tokens, hidden, fused)
    jax.block_until_ready((outs, h_fin))
    assert outs.shape == (T, 1, 2 * HIDDEN_SIZE)
    assert h_fin.shape == (2, 1, HIDDEN_SIZE)
    ref_outs, ref_hfin = reference_sequence(tokens, hidden, params)
    np.testing.assert_allclose(np.asarray(outs), np.asarray(ref_outs), rtol=1e-4, atol=2e-5)
    np.testing.assert_allclose(np.asarray(h_fin), np.asarray(ref_hfin), rtol=1e-4, atol=2e-5)

    print("KERNEL_OK")
</pallas_src>

<mosaic_0001>
module attributes {stable_mosaic.version = 11 : i64} {
  func.func @encoder_gru_kernel(%arg0: i32, %arg1: memref<1xi32, #tpu.memory_space<smem>>, %arg2: memref<1x1x384xf32, #tpu.memory_space<vmem>>, %arg3: memref<128x384xf32, #tpu.memory_space<vmem>>, %arg4: memref<1x128xf32, #tpu.memory_space<vmem>>, %arg5: memref<1x1x128xf32, #tpu.memory_space<vmem>>, %arg6: memref<1x128xf32, #tpu.memory_space<vmem>>) attributes {dimension_semantics = [#tpu.dimension_semantics<arbitrary>], iteration_bounds = array<i64: 1>, scalar_prefetch = 1 : i64, scratch_operands = 1 : i64, tpu.core_type = #tpu.core_type<tc>, window_params = [{transform_indices = @transform_0, window_bounds = array<i64: 1, 1, 384>}, {pipeline_mode = #tpu.pipeline_mode<synchronous>, transform_indices = @transform_1, window_bounds = array<i64: 128, 384>}, {pipeline_mode = #tpu.pipeline_mode<synchronous>, transform_indices = @transform_2, window_bounds = array<i64: 1, 128>}, {transform_indices = @transform_3, window_bounds = array<i64: 1, 1, 128>}]} {
    %c0_i32 = arith.constant 0 : i32
    %0 = arith.cmpi eq, %arg0, %c0_i32 : i32
    %1 = arith.extui %0 : i1 to i32
    %c0_i32_0 = arith.constant 0 : i32
    %2 = arith.cmpi ne, %1, %c0_i32_0 : i32
    scf.if %2 {
      %c0_17 = arith.constant 0 : index
      %c0_18 = arith.constant 0 : index
      %53 = vector.load %arg4[%c0_17, %c0_18] : memref<1x128xf32, #tpu.memory_space<vmem>>, vector<1x128xf32>
      %c0_19 = arith.constant 0 : index
      %c0_20 = arith.constant 0 : index
      %54 = vector.load %arg6[%c0_19, %c0_20] : memref<1x128xf32, #tpu.memory_space<vmem>>, vector<1x128xf32>
      tpu.vector_store %arg6[%c0_19, %c0_20], %53 {strides = array<i32>} : memref<1x128xf32, #tpu.memory_space<vmem>>, vector<1x128xf32>,
    } else {
    }
    %c0 = arith.constant 0 : index
    %c0_1 = arith.constant 0 : index
    %3 = vector.load %arg6[%c0, %c0_1] : memref<1x128xf32, #tpu.memory_space<vmem>>, vector<1x128xf32>
    %c0_2 = arith.constant 0 : index
    %c0_3 = arith.constant 0 : index
    %c0_4 = arith.constant 0 : index
    %4 = vector.load %arg2[%c0_2, %c0_3, %c0_4] : memref<1x1x384xf32, #tpu.memory_space<vmem>>, vector<1x1x384xf32>
    %5 = vector.shape_cast %4 : vector<1x1x384xf32> to vector<1x384xf32>
    %c0_5 = arith.constant 0 : index
    %c0_6 = arith.constant 0 : index
    %6 = vector.load %arg3[%c0_5, %c0_6] : memref<128x384xf32, #tpu.memory_space<vmem>>, vector<128x384xf32>
    %cst = arith.constant dense<0.000000e+00> : vector<1x384xf32>
    %7 = tpu.matmul %3, %6, %cst {dimension_numbers = #tpu.dot_dimension_numbers<[1], [0], [0], [1], [0, 0, 1, 1], [], []>} : vector<1x128xf32>, vector<128x384xf32>, vector<1x384xf32> -> vector<1x384xf32>
    %8 = vector.extract_strided_slice %5 {offsets = [0, 0], sizes = [1, 128], strides = [1, 1]} : vector<1x384xf32> to vector<1x128xf32>
    %9 = vector.extract_strided_slice %7 {offsets = [0, 0], sizes = [1, 128], strides = [1, 1]} : vector<1x384xf32> to vector<1x128xf32>
    %10 = arith.addf %8, %9 : vector<1x128xf32>
    %11 = arith.negf %10 : vector<1x128xf32>
    %12 = math.exp %11 : vector<1x128xf32>
    %cst_7 = arith.constant 1.000000e+00 : f32
    %13 = vector.broadcast %cst_7 : f32 to vector<1x128xf32>
    %14 = arith.addf %13, %12 : vector<1x128xf32>
    %15 = arith.divf %13, %14 : vector<1x128xf32>
    %16 = vector.extract_strided_slice %5 {offsets = [0, 128], sizes = [1, 128], strides = [1, 1]} : vector<1x384xf32> to vector<1x128xf32>
    %17 = vector.extract_strided_slice %7 {offsets = [0, 128], sizes = [1, 128], strides = [1, 1]} : vector<1x384xf32> to vector<1x128xf32>
    %18 = arith.addf %16, %17 : vector<1x128xf32>
    %19 = arith.negf %18 : vector<1x128xf32>
    %20 = math.exp %19 : vector<1x128xf32>
    %cst_8 = arith.constant 1.000000e+00 : f32
    %21 = vector.broadcast %cst_8 : f32 to vector<1x128xf32>
    %22 = arith.addf %21, %20 : vector<1x128xf32>
    %23 = arith.divf %21, %22 : vector<1x128xf32>
    %24 = vector.extract_strided_slice %5 {offsets = [0, 256], sizes = [1, 128], strides = [1, 1]} : vector<1x384xf32> to vector<1x128xf32>
    %25 = vector.extract_strided_slice %7 {offsets = [0, 256], sizes = [1, 128], strides = [1, 1]} : vector<1x384xf32> to vector<1x128xf32>
    %26 = arith.mulf %15, %25 : vector<1x128xf32>
    %27 = arith.addf %24, %26 : vector<1x128xf32>
    %28 = math.tanh %27 : vector<1x128xf32>
    %cst_9 = arith.constant 1.000000e+00 : f32
    %29 = vector.broadcast %cst_9 : f32 to vector<1x128xf32>
    %30 = arith.subf %29, %23 : vector<1x128xf32>
    %31 = arith.mulf %30, %28 : vector<1x128xf32>
    %32 = arith.mulf %23, %3 : vector<1x128xf32>
    %33 = arith.addf %31, %32 : vector<1x128xf32>
    %34 = tpu.iota {dimensions = array<i32: 1>} : vector<1x128xi32>
    %c50_i32 = arith.constant 50 : i32
    %35 = vector.broadcast %c50_i32 : i32 to vector<1x128xi32>
    %36 = arith.cmpi slt, %34, %35 : vector<1x128xi32>
    %c64_i32 = arith.constant 64 : i32
    %37 = vector.broadcast %c64_i32 : i32 to vector<1x128xi32>
    %38 = arith.cmpi sge, %34, %37 : vector<1x128xi32>
    %c114_i32 = arith.constant 114 : i32
    %39 = vector.broadcast %c114_i32 : i32 to vector<1x128xi32>
    %40 = arith.cmpi slt, %34, %39 : vector<1x128xi32>
    %41 = arith.andi %38, %40 : vector<1x128xi1>
    %42 = arith.ori %36, %41 : vector<1x128xi1>
    %cst_10 = arith.constant 0.000000e+00 : f32
    %43 = vector.broadcast %cst_10 : f32 to vector<1x128xf32>
    %44 = arith.select %42, %33, %43 : vector<1x128xi1>, vector<1x128xf32>
    %c127_i32 = arith.constant 127 : i32
    %45 = vector.broadcast %c127_i32 : i32 to vector<1x128xi32>
    %46 = arith.cmpi eq, %34, %45 : vector<1x128xi32>
    %cst_11 = arith.constant 1.000000e+00 : f32
    %47 = vector.broadcast %cst_11 : f32 to vector<1x128xf32>
    %48 = arith.select %46, %47, %44 : vector<1x128xi1>, vector<1x128xf32>
    %c0_12 = arith.constant 0 : index
    %c0_13 = arith.constant 0 : index
    %49 = vector.load %arg6[%c0_12, %c0_13] : memref<1x128xf32, #tpu.memory_space<vmem>>, vector<1x128xf32>
    tpu.vector_store %arg6[%c0_12, %c0_13], %48 {strides = array<i32>} : memref<1x128xf32, #tpu.memory_space<vmem>>, vector<1x128xf32>,
    %c0_14 = arith.constant 0 : index
    %c0_15 = arith.constant 0 : index
    %c0_16 = arith.constant 0 : index
    %50 = vector.load %arg5[%c0_14, %c0_15, %c0_16] : memref<1x1x128xf32, #tpu.memory_space<vmem>>, vector<1x1x128xf32>
    %51 = vector.shape_cast %50 : vector<1x1x128xf32> to vector<1x128xf32>
    %52 = vector.shape_cast %48 : vector<1x128xf32> to vector<1x1x128xf32>
    tpu.vector_store %arg5[%c0_14, %c0_15, %c0_16], %52 {strides = array<i32>} : memref<1x1x128xf32, #tpu.memory_space<vmem>>, vector<1x1x128xf32>,
    return
  }
  func.func @transform_0(%arg0: i32, %arg1: memref<1xi32, #tpu.memory_space<smem>>) -> (i32, i32, i32) {
    %0 = arith.index_cast %arg0 : i32 to index
    %1 = memref.load %arg1[%0] : memref<1xi32, #tpu.memory_space<smem>>
    %c18_i32 = arith.constant 18 : i32
    %2 = arith.cmpi sge, %1, %c18_i32 : i32
    %c2_i32 = arith.constant 2 : i32
    %3 = arith.select %2, %c2_i32, %1 : i32
    %c0_i32 = arith.constant 0 : i32
    %4 = arith.cmpi slt, %3, %c0_i32 : i32
    %c0_i32_0 = arith.constant 0 : i32
    %5 = arith.select %4, %c0_i32_0, %3 : i32
    %c0_i32_1 = arith.constant 0 : i32
    %c0_i32_2 = arith.constant 0 : i32
    %c0_i32_3 = arith.constant 0 : i32
    return %5, %c0_i32_1, %c0_i32_2 : i32, i32, i32
  }
  func.func @transform_1(%arg0: i32, %arg1: memref<1xi32, #tpu.memory_space<smem>>) -> (i32, i32) {
    %c0_i32 = arith.constant 0 : i32
    %c0_i32_0 = arith.constant 0 : i32
    %c0_i32_1 = arith.constant 0 : i32
    return %c0_i32, %c0_i32_0 : i32, i32
  }
  func.func @transform_2(%arg0: i32, %arg1: memref<1xi32, #tpu.memory_space<smem>>) -> (i32, i32) {
    %c0_i32 = arith.constant 0 : i32
    %c0_i32_0 = arith.constant 0 : i32
    %c0_i32_1 = arith.constant 0 : i32
    return %c0_i32, %c0_i32_0 : i32, i32
  }
  func.func @transform_3(%arg0: i32, %arg1: memref<1xi32, #tpu.memory_space<smem>>) -> (i32, i32, i32) {
    %c0_i32 = arith.constant 0 : i32
    %c0_i32_0 = arith.constant 0 : i32
    %c0_i32_1 = arith.constant 0 : i32
    return %arg0, %c0_i32, %c0_i32_0 : i32, i32, i32
  }
}

</mosaic_0001>

<llo_original>
// kernel: tpu_custom_call.1
$region0: #{tpu_custom_call.1}
  #allocation0 [shape = 'u32[]', space=smem, size = 0x4, offset = 0x4, fixed_abs, tag = 'smem constant byte address 0x4 - core index']
  #allocation1 [shape = 'u32[144,128]{1,0:T(1,128)}', space=vmem, size = 0x12000, scoped, tag = 'internal scratch']
  #allocation2 [shape = 'f32[1,128]{1,0:T(1,128)}', space=vmem, size = 0x200, scoped, tag = 'scratch operand']
  #allocation3 [shape = 's32[1]{0}', space=sflag, size = 0x4, scoped, tag = 'scoped memory for tpu_custom_call.1']
  #allocation4 [shape = 's32[1]{0:T(128)S(6)}', space=smem, size = 0x200, scoped, tag = 'prefetched SMEM operand 0']
  %s0 = inlined_call_operand.<no memory space> [shape: s32[1], index: 0, kind: input, shape index: {}]
  %s1 = inlined_call_operand.hbm [shape: f32[18,1,384], index: 1, kind: input, shape index: {}]
  %s2 = inlined_call_operand.hbm [shape: f32[128,384], index: 2, kind: input, shape index: {}]
  %s3 = inlined_call_operand.vmem [shape: f32[1,128], index: 3, kind: input, shape index: {}]
  %s4 = inlined_call_operand.hbm [shape: f32[1,1,128], index: 4, kind: output, shape index: {}]
  %s5 = sld [smem:[#allocation0]]
  $region34: #{tpu_custom_call.1} parent=0
    _
  %s7 = ssub.s32 1, %s5
  %s8 = scalar_select 0, %s7, %s5
  %9 = sst [smem:[#allocation4]] %s0
  $region1: #{tpu_custom_call.1} parent=0
    #allocation5 [shape = 'u8[1536]{0}', space=vmem, size = 0x800, scoped, tag = 'input window, operand 1, single buffered']
    #allocation6 [shape = 's32[1]{0}', space=sflag, size = 0x4, scoped, tag = 'scoped memory for tpu_custom_call.1']
    #allocation7 [shape = 's32[1]{0}', space=sflag, size = 0x4, scoped, tag = 'scoped memory for tpu_custom_call.1']
    #allocation8 [shape = 'u8[196608]{0}', space=vmem, size = 0x30000, scoped, tag = 'input window, operand 2, single buffered']
    #allocation9 [shape = 's32[1]{0}', space=sflag, size = 0x4, scoped, tag = 'scoped memory for tpu_custom_call.1']
    #allocation10 [shape = 'u8[512]{0}', space=vmem, size = 0x400, scoped, tag = 'output window, operand 0, single buffered']
    %10 = vsyncpa [#allocation6], 0
    %11 = vsyncpa [#allocation9], 0
    %12 = vsyncpa [#allocation7], 0
    // Predicated region
    $region2: #{tpu_custom_call.1} parent=1 // pred_check
      _
    $region3: #{tpu_custom_call.1} parent=1 // pred_check_branch
      %14 = sbr.rel (0) target = $region5
    $region4: #{tpu_custom_call.1} parent=1 // pred_region
      %s15 = sld [smem:[#allocation4]]
      %p16 = scmp.ge.s32.totalorder %s15, 18
      %s17 = scalar_select %p16, 2, %s15
      %p18 = scmp.lt.s32.totalorder %s17, 0
      %s19 = scalar_select %p18, 0, %s17
      %s21 = ssub.s32 48, 48
      %22 = vsyncadd [#allocation6], %s21
      %s23 = smul.addr %s19, 3
      %s24 = smul.addr %s23, 16
      %s25 = scalar_lea.hbm %s1, %s24
      %s27 = sshll.u32 [#allocation5], 4
      %s28 = int_to_ptr.vmem [resolvable:$true] %s27
      %30 = dma.hbm_to_vmem [thread:$0]  %s25, 48, %s28, [#allocation6]
    $region5: #{tpu_custom_call.1} parent=1 // pred_fallthru
      _
    // Predicated region
    $region6: #{tpu_custom_call.1} parent=1 // pred_check
      _
    $region7: #{tpu_custom_call.1} parent=1 // pred_check_branch
      %32 = sbr.rel (0) target = $region9
    $region8: #{tpu_custom_call.1} parent=1 // pred_region
      %s34 = ssub.s32 6144, 6144
      %35 = vsyncadd [#allocation9], %s34
      %s36 = sshll.u32 [#allocation8], 4
      %s37 = int_to_ptr.vmem [resolvable:$true] %s36
      %42 = dma.hbm_to_vmem [thread:$0]  %s2, 6144, %s37, [#allocation9], 384, 384, 24
    $region9: #{tpu_custom_call.1} parent=1 // pred_fallthru
      _
    // Predicated region
    $region10: #{tpu_custom_call.1} parent=1 // pred_check
      _
    $region11: #{tpu_custom_call.1} parent=1 // pred_check_branch
      %44 = sbr.rel (0) target = $region13
    $region12: #{tpu_custom_call.1} parent=1 // pred_region
      _
    $region13: #{tpu_custom_call.1} parent=1 // pred_fallthru
      _
    // Predicated region
    $region14: #{tpu_custom_call.1} parent=1 // pred_check
      _
    $region15: #{tpu_custom_call.1} parent=1 // pred_check_branch
      %46 = sbr.rel (0) target = $region17
    $region16: #{tpu_custom_call.1} parent=1 // pred_region
      %47 = dma.done [#allocation6], 48
    $region17: #{tpu_custom_call.1} parent=1 // pred_fallthru
      _
    // Predicated region
    $region18: #{tpu_custom_call.1} parent=1 // pred_check
      _
    $region19: #{tpu_custom_call.1} parent=1 // pred_check_branch
      %49 = sbr.rel (0) target = $region21
    $region20: #{tpu_custom_call.1} parent=1 // pred_region
      %50 = dma.done [#allocation9], 6144
    $region21: #{tpu_custom_call.1} parent=1 // pred_fallthru
      _
    %s51 = sld [smem:[#allocation4]]
    %p52 = scmp.ge.s32.totalorder %s51, 18
    %s53 = scalar_select %p52, 2, %s51
    %p54 = scmp.lt.s32.totalorder %s53, 0
    %s55 = scalar_select %p54, 0, %s53
    %p56 = scmp.eq.s32.totalorder 0, 0
    // Predicated region
    $region22: #{tpu_custom_call.1} parent=1 // pred_check
      %p57 = pneg %p56
    $region23: #{tpu_custom_call.1} parent=1 // pred_check_branch
      %59 = sbr.rel (%p57) target = $region25
    $region24: #{tpu_custom_call.1} parent=1 // pred_region
      %v60 = vld [vmem:[%s3] sm:$0x1]
      %61 = vst [vmem:[#allocation2] sm:$0x1] %v60
    $region25: #{tpu_custom_call.1} parent=1 // pred_fallthru
      _
    %v62 = vld [vmem:[#allocation2] sm:$0x1]
    %v63 = vld [vmem:[#allocation5] sm:$0x7]
    %v64 = vld [vmem:[#allocation8] sm:$0xff]
    %v65 = vld [vmem:[#allocation8 + $0x8] sm:$0xff]
    %v66 = vld [vmem:[#allocation8 + $0x10] sm:$0xff]
    %v67 = vld [vmem:[#allocation8 + $0x18] sm:$0xff]
    %v68 = vld [vmem:[#allocation8 + $0x20] sm:$0xff]
    %v69 = vld [vmem:[#allocation8 + $0x28] sm:$0xff]
    %v70 = vld [vmem:[#allocation8 + $0x30] sm:$0xff]
    %v71 = vld [vmem:[#allocation8 + $0x38] sm:$0xff]
    %v72 = vld [vmem:[#allocation8 + $0x40] sm:$0xff]
    %v73 = vld [vmem:[#allocation8 + $0x48] sm:$0xff]
    %v74 = vld [vmem:[#allocation8 + $0x50] sm:$0xff]
    %v75 = vld [vmem:[#allocation8 + $0x58] sm:$0xff]
    %v76 = vld [vmem:[#allocation8 + $0x60] sm:$0xff]
    %v77 = vld [vmem:[#allocation8 + $0x68] sm:$0xff]
    %v78 = vld [vmem:[#allocation8 + $0x70] sm:$0xff]
    %v79 = vld [vmem:[#allocation8 + $0x78] sm:$0xff]
    %v80 = vld [vmem:[#allocation8 + $0x80] sm:$0xff]
    %v81 = vld [vmem:[#allocation8 + $0x88] sm:$0xff]
    %v82 = vld [vmem:[#allocation8 + $0x90] sm:$0xff]
    %v83 = vld [vmem:[#allocation8 + $0x98] sm:$0xff]
    %v84 = vld [vmem:[#allocation8 + $0xa0] sm:$0xff]
    %v85 = vld [vmem:[#allocation8 + $0xa8] sm:$0xff]
    %v86 = vld [vmem:[#allocation8 + $0xb0] sm:$0xff]
    %v87 = vld [vmem:[#allocation8 + $0xb8] sm:$0xff]
    %v88 = vld [vmem:[#allocation8 + $0xc0] sm:$0xff]
    %v89 = vld [vmem:[#allocation8 + $0xc8] sm:$0xff]
    %v90 = vld [vmem:[#allocation8 + $0xd0] sm:$0xff]
    %v91 = vld [vmem:[#allocation8 + $0xd8] sm:$0xff]
    %v92 = vld [vmem:[#allocation8 + $0xe0] sm:$0xff]
    %v93 = vld [vmem:[#allocation8 + $0xe8] sm:$0xff]
    %v94 = vld [vmem:[#allocation8 + $0xf0] sm:$0xff]
    %v95 = vld [vmem:[#allocation8 + $0xf8] sm:$0xff]
    %v96 = vld [vmem:[#allocation8 + $0x100] sm:$0xff]
    %v97 = vld [vmem:[#allocation8 + $0x108] sm:$0xff]
    %v98 = vld [vmem:[#allocation8 + $0x110] sm:$0xff]
    %v99 = vld [vmem:[#allocation8 + $0x118] sm:$0xff]
    %v100 = vld [vmem:[#allocation8 + $0x120] sm:$0xff]
    %v101 = vld [vmem:[#allocation8 + $0x128] sm:$0xff]
    %v102 = vld [vmem:[#allocation8 + $0x130] sm:$0xff]
    %v103 = vld [vmem:[#allocation8 + $0x138] sm:$0xff]
    %v104 = vld [vmem:[#allocation8 + $0x140] sm:$0xff]
    %v105 = vld [vmem:[#allocation8 + $0x148] sm:$0xff]
    %v106 = vld [vmem:[#allocation8 + $0x150] sm:$0xff]
    %v107 = vld [vmem:[#allocation8 + $0x158] sm:$0xff]
    %v108 = vld [vmem:[#allocation8 + $0x160] sm:$0xff]
    %v109 = vld [vmem:[#allocation8 + $0x168] sm:$0xff]
    %v110 = vld [vmem:[#allocation8 + $0x170] sm:$0xff]
    %v111 = vld [vmem:[#allocation8 + $0x178] sm:$0xff]
    %112 = vmatprep.subr.mxu0 %v65
    %113 = vmatpush1.msra.mxu0 %v64
    %114 = vmatprep.subr.mxu0 %v68
    %115 = vmatpush1.msra.mxu0 %v67
    %116 = vmatprep.subr.mxu0 %v71
    %117 = vmatpush1.msra.mxu0 %v70
    %118 = vmatprep.subr.mxu0 %v74
    %119 = vmatpush1.msra.mxu0 %v73
    %120 = vmatprep.subr.mxu0 %v77
    %121 = vmatpush1.msra.mxu0 %v76
    %122 = vmatprep.subr.mxu0 %v80
    %123 = vmatpush1.msra.mxu0 %v79
    %124 = vmatprep.subr.mxu0 %v83
    %125 = vmatpush1.msra.mxu0 %v82
    %126 = vmatprep.subr.mxu0 %v86
    %127 = vmatpush1.msra.mxu0 %v85
    %128 = vmatprep.subr.mxu0 %v89
    %129 = vmatpush1.msra.mxu0 %v88
    %130 = vmatprep.subr.mxu0 %v92
    %131 = vmatpush1.msra.mxu0 %v91
    %132 = vmatprep.subr.mxu0 %v95
    %133 = vmatpush1.msra.mxu0 %v94
    %134 = vmatprep.subr.mxu0 %v98
    %135 = vmatpush1.msra.mxu0 %v97
    %136 = vmatprep.subr.mxu0 %v101
    %137 = vmatpush1.msra.mxu0 %v100
    %138 = vmatprep.subr.mxu0 %v104
    %139 = vmatpush1.msra.mxu0 %v103
    %140 = vmatprep.subr.mxu0 %v107
    %141 = vmatpush1.msra.mxu0 %v106
    %142 = vmatprep.subr.mxu0 %v110
    %143 = vmatpush1.msra.mxu0 %v109
    %144 = vmatprep.subr.mxu0 0.0
    %145 = vmatpush1.msra.mxu0 0.0
    %146 = vmatprep.subr.mxu0 0.0
    %147 = vmatpush1.msra.mxu0 0.0
    %148 = vmatprep.subr.mxu0 0.0
    %149 = vmatpush1.msra.mxu0 0.0
    %150 = vmatprep.subr.mxu0 0.0
    %151 = vmatpush1.msra.mxu0 0.0
    %152 = vmatprep.subr.mxu0 0.0
    %153 = vmatpush1.msra.mxu0 0.0
    %154 = vmatprep.subr.mxu0 0.0
    %155 = vmatpush1.msra.mxu0 0.0
    %156 = vmatprep.subr.mxu0 0.0
    %157 = vmatpush1.msra.mxu0 0.0
    %158 = vmatprep.subr.mxu0 0.0
    %159 = vmatpush1.msra.mxu0 0.0
    %160 = vmatprep.subr.mxu0 0.0
    %161 = vmatpush1.msra.mxu0 0.0
    %162 = vmatprep.subr.mxu0 0.0
    %163 = vmatpush1.msra.mxu0 0.0
    %164 = vmatprep.subr.mxu0 0.0
    %165 = vmatpush1.msra.mxu0 0.0
    %166 = vmatprep.subr.mxu0 0.0
    %167 = vmatpush1.msra.mxu0 0.0
    %168 = vmatprep.subr.mxu0 0.0
    %169 = vmatpush1.msra.mxu0 0.0
    %170 = vmatprep.subr.mxu0 0.0
    %171 = vmatpush1.msra.mxu0 0.0
    %172 = vmatprep.subr.mxu0 0.0
    %173 = vmatpush1.msra.mxu0 0.0
    %174 = vmatprep.subr.mxu0 0.0
    %175 = vmatpush1.msra.mxu0 0.0
    %176 = vmatprep.mubr.f32.mxu0 0.0
    %177 = vmatmul.mubr.f32.gmra.mrb[0].mxu0 %v62
    %v178 = vpop.f32.mrb[0].mxu0
    %v179 = vadd.f32 0.0, %v178
    %v180 = vpop.f32.mrb[0].mxu0
    %v181 = vadd.f32 0.0, %v180
    %182 = vdwg.mxu0
    %183 = vmatprep.subr.mxu0 0.0
    %184 = vmatpush1.msra.mxu0 %v66
    %185 = vmatprep.subr.mxu0 0.0
    %186 = vmatpush1.msra.mxu0 %v69
    %187 = vmatprep.subr.mxu0 0.0
    %188 = vmatpush1.msra.mxu0 %v72
    %189 = vmatprep.subr.mxu0 0.0
    %190 = vmatpush1.msra.mxu0 %v75
    %191 = vmatprep.subr.mxu0 0.0
    %192 = vmatpush1.msra.mxu0 %v78
    %193 = vmatprep.subr.mxu0 0.0
    %194 = vmatpush1.msra.mxu0 %v81
    %195 = vmatprep.subr.mxu0 0.0
    %196 = vmatpush1.msra.mxu0 %v84
    %197 = vmatprep.subr.mxu0 0.0
    %198 = vmatpush1.msra.mxu0 %v87
    %199 = vmatprep.subr.mxu0 0.0
    %200 = vmatpush1.msra.mxu0 %v90
    %201 = vmatprep.subr.mxu0 0.0
    %202 = vmatpush1.msra.mxu0 %v93
    %203 = vmatprep.subr.mxu0 0.0
    %204 = vmatpush1.msra.mxu0 %v96
    %205 = vmatprep.subr.mxu0 0.0
    %206 = vmatpush1.msra.mxu0 %v99
    %207 = vmatprep.subr.mxu0 0.0
    %208 = vmatpush1.msra.mxu0 %v102
    %209 = vmatprep.subr.mxu0 0.0
    %210 = vmatpush1.msra.mxu0 %v105
    %211 = vmatprep.subr.mxu0 0.0
    %212 = vmatpush1.msra.mxu0 %v108
    %213 = vmatprep.subr.mxu0 0.0
    %214 = vmatpush1.msra.mxu0 %v111
    %215 = vmatprep.subr.mxu0 0.0
    %216 = vmatpush1.msra.mxu0 0.0
    %217 = vmatprep.subr.mxu0 0.0
    %218 = vmatpush1.msra.mxu0 0.0
    %219 = vmatprep.subr.mxu0 0.0
    %220 = vmatpush1.msra.mxu0 0.0
    %221 = vmatprep.subr.mxu0 0.0
    %222 = vmatpush1.msra.mxu0 0.0
    %223 = vmatprep.subr.mxu0 0.0
    %224 = vmatpush1.msra.mxu0 0.0
    %225 = vmatprep.subr.mxu0 0.0
    %226 = vmatpush1.msra.mxu0 0.0
    %227 = vmatprep.subr.mxu0 0.0
    %228 = vmatpush1.msra.mxu0 0.0
    %229 = vmatprep.subr.mxu0 0.0
    %230 = vmatpush1.msra.mxu0 0.0
    %231 = vmatprep.subr.mxu0 0.0
    %232 = vmatpush1.msra.mxu0 0.0
    %233 = vmatprep.subr.mxu0 0.0
    %234 = vmatpush1.msra.mxu0 0.0
    %235 = vmatprep.subr.mxu0 0.0
    %236 = vmatpush1.msra.mxu0 0.0
    %237 = vmatprep.subr.mxu0 0.0
    %238 = vmatpush1.msra.mxu0 0.0
    %239 = vmatprep.subr.mxu0 0.0
    %240 = vmatpush1.msra.mxu0 0.0
    %241 = vmatprep.subr.mxu0 0.0
    %242 = vmatpush1.msra.mxu0 0.0
    %243 = vmatprep.subr.mxu0 0.0
    %244 = vmatpush1.msra.mxu0 0.0
    %245 = vmatprep.subr.mxu0 0.0
    %246 = vmatpush1.msra.mxu0 0.0
    %247 = vmatprep.mubr.f32.mxu0 0.0
    %248 = vmatmul.mubr.f32.gmra.mrb[0].mxu0 %v62
    %v249 = vpop.f32.mrb[0].mxu0
    %v250 = vadd.f32 0.0, %v249
    %v251 = vpop.f32.mrb[0].mxu0
    %252 = vdwg.mxu0
    %v253 = vadd.f32 %v63, %v179
    %v254 = vxor.u32 %v253, 2147483648
    %v255 = vmul.f32 %v254, 1.442695
    %v256 = vpow.pop %v255
    %v257 = vadd.f32 %v256, 1.0
    %v258 = vrcp.pop %v257
    %v259 = vmul.f32 1.0, %v258
    %v261 = vrot.slane %v63, 1
    %v263 = vadd.f32 %v261, %v181
    %v264 = vxor.u32 %v263, 2147483648
    %v265 = vmul.f32 %v264, 1.442695
    %v266 = vpow.pop %v265
    %v267 = vadd.f32 %v266, 1.0
    %v268 = vrcp.pop %v267
    %v269 = vmul.f32 1.0, %v268
    %v270 = vmul.f32 %v259, %v250
    %v271 = vrot.slane %v63, 2
    %v273 = vadd.f32 %v271, %v270
    %v274 = vtanh.pop %v273
    %v275 = vsub.f32 1.0, %v269
    %v276 = vmul.f32 %v275, %v274
    %v277 = vmul.f32 %v269, %v62
    %v278 = vadd.f32 %v276, %v277
    %v279 = vlaneseq
    %v280 = vand.u32 %v279, 127
    %vm281 = vcmp.lt.s32.totalorder %v280, 50
    %vm282 = vcmp.ge.s32.totalorder %v280, 64
    %vm283 = vcmp.lt.s32.totalorder %v280, 114
    %vm284 = vmand %vm282, %vm283
    %vm285 = vmor %vm281, %vm284
    %v286 = vsel %vm285, %v278, 0.0
    %vm287 = vcmp.eq.s32.totalorder %v280, 127
    %v288 = vsel %vm287, 1.0, %v286
    %289 = vst [vmem:[#allocation2] sm:$0x1] %v288
    %290 = vst [vmem:[#allocation10] sm:$0x1] %v288
    // Predicated region
    $region26: #{tpu_custom_call.1} parent=1 // pred_check
      _
    $region27: #{tpu_custom_call.1} parent=1 // pred_check_branch
      %292 = sbr.rel (0) target = $region29
    $region28: #{tpu_custom_call.1} parent=1 // pred_region
      %s294 = ssub.s32 16, 16
      %295 = vsyncadd [#allocation7], %s294
      %s297 = sshll.u32 [#allocation10], 4
      %s298 = int_to_ptr.vmem [resolvable:$true] %s297
      %300 = dma.vmem_to_hbm [thread:$0]  %s298, 16, %s4, [#allocation7]
    $region29: #{tpu_custom_call.1} parent=1 // pred_fallthru
      _
    // Predicated region
    $region30: #{tpu_custom_call.1} parent=1 // pred_check
      _
    $region31: #{tpu_custom_call.1} parent=1 // pred_check_branch
      %302 = sbr.rel (0) target = $region33
    $region32: #{tpu_custom_call.1} parent=1 // pred_region
      %303 = dma.done [#allocation7], 16
    $region33: #{tpu_custom_call.1} parent=1 // pred_fallthru
      _
    %304 = vsyncpa [#allocation6], 1
    %305 = vsyncpa [#allocation9], 1
    %306 = vsyncpa [#allocation7], 1

</llo_original>
